<compile_context>
chip_gen: v7x
topology: tpu7x:2x2x1
jax: 0.10.0
libtpu: 0.0.40
codegen_flags: <defaults>
</compile_context>

<pallas_src>
import functools

import jax
import jax.numpy as jnp
import numpy as np
from jax.experimental import pallas as pl
from jax.experimental.pallas import tpu as pltpu


# ---------------------------------------------------------------------------
# Pallas kernel: per-(token-tile, expert, I-chunk) SwiGLU FFN + weighted acc
# ---------------------------------------------------------------------------
def _moe_expert_kernel(mask_ref, eff_ref, x_ref, wg_ref, wu_ref, wd_ref, cw_ref,
                       out_ref, *acc_scratch):
    del eff_ref  # only consumed by the weight index_maps (DMA elision)
    # When out dtype is f32 the accumulator lives directly in out_ref.
    acc_ref = acc_scratch[0] if acc_scratch else out_ref

    i = pl.program_id(0)   # token tile            (parallel)
    e = pl.program_id(1)   # expert                (accumulation axis)
    k = pl.program_id(2)   # intermediate chunk    (accumulation axis)

    @pl.when(jnp.logical_and(e == 0, k == 0))
    def _init():
        acc_ref[...] = jnp.zeros_like(acc_ref)

    # Skip (token-tile, expert) pairs with no routed tokens (MXU work; the
    # matching weight DMA is elided by the data-dependent index_maps).
    @pl.when(mask_ref[i, e] != 0)
    def _compute():
        x = x_ref[...]                                                   # (tT, H)  bf16
        g = jnp.dot(x, wg_ref[...], preferred_element_type=jnp.float32)  # (tT, tI) f32
        u = jnp.dot(x, wu_ref[...], preferred_element_type=jnp.float32)  # (tT, tI) f32
        h = (g * jax.nn.sigmoid(g)) * u                                  # SwiGLU   f32
        y = jnp.dot(h.astype(wd_ref.dtype), wd_ref[...],
                    preferred_element_type=jnp.float32)                  # (tT, H)  f32
        acc_ref[...] += cw_ref[...] * y

    if acc_scratch:  # non-f32 output: cast once at the end of the reduction
        @pl.when(jnp.logical_and(e == pl.num_programs(1) - 1,
                                 k == pl.num_programs(2) - 1))
        def _finalize():
            out_ref[...] = acc_ref[...].astype(out_ref.dtype)


# ---------------------------------------------------------------------------
# Tile-size heuristics (static, trace time) — per-generation, VMEM-fitted
# ---------------------------------------------------------------------------
def _vmem_capacity_bytes():
    try:
        return int(pltpu.get_tpu_info().vmem_capacity_bytes)
    except Exception:
        return 64 * 1024 * 1024  # conservative fallback (v7x per-TensorCore)


def _vmem_estimate(tT, tI, H, out_itemsize, fuse_acc):
    bf = 2                                  # bf16 activations / weights
    est = 2 * tT * H * bf                   # x            (double-buffered)
    est += 3 * 2 * H * tI * bf              # wg, wu, wd   (double-buffered)
    est += 2 * tT * 4                       # combine weights
    est += 2 * tT * H * out_itemsize        # out          (double-buffered)
    if not fuse_acc:
        est += tT * H * 4                   # fp32 accumulator scratch
    return est


def _select_tiles(T, I, H, out_itemsize, fuse_acc, vmem_cap):
    """Pick (token_tile, i_chunk). Weights are re-streamed T/tT times, so tT
    must be large enough to reach the MXU roofline, but the working set must
    fit physical VMEM (64 MiB on v7x, 128 MiB on v5e/v6e)."""
    budget = int(0.80 * vmem_cap)
    big_vmem = vmem_cap > (80 << 20)        # v5e/v6e (128 MiB) vs v7x (64 MiB)
    tT_target = 1024 if big_vmem else 512
    tI_target = 512 if big_vmem else 256

    tok_cands = [t for t in range(8, min(T, tT_target) + 1, 8) if T % t == 0] or [T]
    # prefer: >=2 tiles (both v7x TCs busy), multiple of 16 (bf16 sublanes),
    # even tile count (clean megacore split), then size.
    tok_cands.sort(key=lambda t: ((T // t) >= 2, t % 16 == 0, (T // t) % 2 == 0, t),
                   reverse=True)

    i_cands = [c for c in range(128, min(I, tI_target) + 1, 128) if I % c == 0]
    if I <= tI_target and I not in i_cands:
        i_cands.append(I)                   # single k chunk when it fits
    if not i_cands:
        i_cands = [I]
    i_cands.sort(reverse=True)

    for tT in tok_cands:
        for tI in i_cands:
            if _vmem_estimate(tT, tI, H, out_itemsize, fuse_acc) <= budget:
                return tT, tI
    return min(tok_cands), min(i_cands)     # smallest fallback


# ---------------------------------------------------------------------------
# Pallas wrapper
# ---------------------------------------------------------------------------
def moe_expert_mix(x_flat, combine_etk, wg, wu, wd, tile_mask, eff_e, *,
                   token_tile, i_chunk, out_dtype):
    """x_flat: [T,H] bf16; combine_etk: [E,T,1] f32; wg/wu: [E,H,I] bf16;
       wd: [E,I,H] bf16; tile_mask/eff_e: [T//tT, E] int32."""
    T, H = x_flat.shape
    E, I, _ = wd.shape
    tT, tI = token_tile, i_chunk
    assert T % tT == 0 and I % tI == 0
    nk = I // tI
    fuse_acc = jnp.dtype(out_dtype) == jnp.dtype(jnp.float32)

    grid = (T // tT, E, nk)

    # Data-dependent weight index_maps: masked-off (i, e) pairs map to the
    # previously fetched weight block so Pallas elides the redundant DMA.
    def _eff_block(i, e, k, mask, eff):
        a = mask[i, e]                                   # 0 / 1
        be = eff[i, e]                                   # e if active else last fetched expert
        bk = a * k + (1 - a) * (nk - 1)                  # k if active else last fetched chunk
        return be, bk

    def wgu_map(i, e, k, mask, eff):
        be, bk = _eff_block(i, e, k, mask, eff)
        return (be, 0, bk)

    def wd_map(i, e, k, mask, eff):
        be, bk = _eff_block(i, e, k, mask, eff)
        return (be, bk, 0)

    vmem_cap = _vmem_capacity_bytes()
    est = _vmem_estimate(tT, tI, H, jnp.dtype(out_dtype).itemsize, fuse_acc)
    # Never exceed physical VMEM (v7x: 64 MiB); leave ~15% headroom.
    vmem_limit = int(min(0.85 * vmem_cap, max(32 * 1024 * 1024, int(1.25 * est))))

    cost = pl.CostEstimate(
        flops=6 * T * H * I * E,                         # dense upper bound
        transcendentals=T * I * E,                       # sigmoid
        bytes_accessed=(T * H * 2
                        + T * H * jnp.dtype(out_dtype).itemsize
                        + (T // tT) * E * (3 * H * I) * 2
                        + E * T * 4))

    scratch = [] if fuse_acc else [pltpu.VMEM((tT, H), jnp.float32)]

    return pl.pallas_call(
        _moe_expert_kernel,
        out_shape=jax.ShapeDtypeStruct((T, H), out_dtype),
        grid_spec=pltpu.PrefetchScalarGridSpec(
            num_scalar_prefetch=2,                       # tile_mask, eff_e -> SMEM
            grid=grid,
            in_specs=[
                pl.BlockSpec((tT, H), lambda i, e, k, m, f: (i, 0)),          # x tile
                pl.BlockSpec((pl.Squeezed(), H, tI), wgu_map),                # Wg chunk
                pl.BlockSpec((pl.Squeezed(), H, tI), wgu_map),                # Wu chunk
                pl.BlockSpec((pl.Squeezed(), tI, H), wd_map),                 # Wd chunk
                pl.BlockSpec((pl.Squeezed(), tT, 1),
                             lambda i, e, k, m, f: (e, i, 0)),                # combine[e]
            ],
            out_specs=pl.BlockSpec((tT, H), lambda i, e, k, m, f: (i, 0)),
            scratch_shapes=scratch,
        ),
        compiler_params=pltpu.CompilerParams(
            dimension_semantics=("parallel", "arbitrary", "arbitrary"),
            vmem_limit_bytes=vmem_limit),
        cost_estimate=cost,
    )(tile_mask, eff_e, x_flat, wg, wu, wd, combine_etk)


# ---------------------------------------------------------------------------
# MoE layer (gating glue in plain JAX, expert hot path in Pallas)
# ---------------------------------------------------------------------------
def moe_layer_forward(hidden_states, params, *, top_k, load_balance_weight=0.01,
                      token_tile=None, i_chunk=None):
    """hidden_states: [B, S, H] -> (output [B, S, H], stats dict)."""
    B, S, H = hidden_states.shape
    T = B * S
    x_flat = hidden_states.reshape(T, H)

    gate_w = params["gate_w"]            # [H, E]     f32
    wg = params["wg"]                    # [E, H, I]  bf16
    wu = params["wu"]                    # [E, H, I]  bf16
    wd = params["wd"]                    # [E, I, H]  bf16
    E = wg.shape[0]
    I = wg.shape[2]

    # --- gate: softmax + top-k (fp32, tiny); raw top-k softmax probs ---
    logits = x_flat.astype(jnp.float32) @ gate_w             # [T, E]
    probs = jax.nn.softmax(logits, axis=-1)                  # [T, E]
    top_vals, top_idx = jax.lax.top_k(probs, top_k)          # [T, K]

    combine = jnp.zeros((T, E), jnp.float32)
    combine = combine.at[jnp.arange(T)[:, None], top_idx].set(top_vals)   # [T, E]
    combine_etk = jnp.transpose(combine)[..., None]           # [E, T, 1]

    out_dtype = hidden_states.dtype
    fuse_acc = jnp.dtype(out_dtype) == jnp.dtype(jnp.float32)
    vmem_cap = _vmem_capacity_bytes()
    auto_tT, auto_tI = _select_tiles(T, I, H, jnp.dtype(out_dtype).itemsize,
                                     fuse_acc, vmem_cap)
    tT = token_tile or auto_tT
    tI = i_chunk or auto_tI

    # per-(token-tile, expert) activity mask + "last fetched expert" table
    n_tiles = T // tT
    tile_mask = (combine.reshape(n_tiles, tT, E) > 0).any(axis=1).astype(jnp.int32)
    flat_mask = tile_mask.reshape(-1)
    e_ids_flat = jnp.tile(jnp.arange(E, dtype=jnp.int32), n_tiles)

    def _carry(prev, me):
        m, e = me
        return jnp.where(m != 0, e, prev), prev            # carry = last active expert

    _, prev_active = jax.lax.scan(_carry, jnp.int32(0), (flat_mask, e_ids_flat))
    e_ids = e_ids_flat.reshape(n_tiles, E)
    eff_e = jnp.where(tile_mask != 0, e_ids,
                      prev_active.reshape(n_tiles, E)).astype(jnp.int32)

    # --- expert FFNs + weighted combine (Pallas hot path, bf16 MXU) ---
    out_flat = moe_expert_mix(x_flat.astype(jnp.bfloat16), combine_etk,
                              wg, wu, wd, tile_mask, eff_e,
                              token_tile=tT, i_chunk=tI, out_dtype=out_dtype)
    output = out_flat.reshape(B, S, H)

    # --- load balance aux loss (GShard/Switch style) ---
    dispatch_mask = (combine > 0).astype(jnp.float32)        # [T, E]
    frac_tokens = dispatch_mask.mean(axis=0)                 # f_e
    mean_probs = probs.mean(axis=0)                          # P_e
    lb_loss = E * jnp.sum(frac_tokens * mean_probs)
    total_loss = lb_loss * load_balance_weight

    expert_tokens = dispatch_mask.sum(axis=0)
    stats = {
        "routing_loss": lb_loss,
        "total_loss": total_loss,
        "active_experts": jnp.sum(expert_tokens > 0).astype(jnp.int32),
        "expert_utilization": expert_tokens,
    }
    return output, stats


# ---------------------------------------------------------------------------
# Params
# ---------------------------------------------------------------------------
def init_params(key, hidden_size, num_experts, intermediate_size):
    k0, k1, k2, k3 = jax.random.split(key, 4)
    scale_h = 1.0 / np.sqrt(hidden_size)
    scale_i = 1.0 / np.sqrt(intermediate_size)
    return {
        "gate_w": jax.random.normal(k0, (hidden_size, num_experts), jnp.float32) * scale_h,
        "wg": jax.random.normal(k1, (num_experts, hidden_size, intermediate_size), jnp.float32) * scale_h,
        "wu": jax.random.normal(k2, (num_experts, hidden_size, intermediate_size), jnp.float32) * scale_h,
        "wd": jax.random.normal(k3, (num_experts, intermediate_size, hidden_size), jnp.float32) * scale_i,
    }


def prepare_kernel_params(params):
    """Expert weights stored as bf16 for MXU-native matmuls (fp32 accumulate)."""
    return {"gate_w": params["gate_w"],
            "wg": params["wg"].astype(jnp.bfloat16),
            "wu": params["wu"].astype(jnp.bfloat16),
            "wd": params["wd"].astype(jnp.bfloat16)}


# ---------------------------------------------------------------------------
# Pure-JAX reference (mirrors the kernel's bf16 numerics)
# ---------------------------------------------------------------------------
def _reference_moe(x_flat, combine_etk, wg_bf, wu_bf, wd_bf):
    E = wg_bf.shape[0]
    x_bf = x_flat.astype(jnp.bfloat16)
    out = jnp.zeros(x_flat.shape, jnp.float32)
    for e in range(E):
        g = jnp.dot(x_bf, wg_bf[e], preferred_element_type=jnp.float32)
        u = jnp.dot(x_bf, wu_bf[e], preferred_element_type=jnp.float32)
        h = (g * jax.nn.sigmoid(g)) * u
        y = jnp.dot(h.astype(jnp.bfloat16), wd_bf[e], preferred_element_type=jnp.float32)
        out = out + combine_etk[e] * y
    return out


if __name__ == "__main__":
    # MoEConfig: hidden_size=32, num_experts=4, top_k=2,
    #            expert_intermediate_size = hidden_size * 4 = 128
    B, S, H = 2, 8, 32
    E, K, I = 4, 2, 128

    key = jax.random.PRNGKey(0)
    k_x, k_p = jax.random.split(key)
    hidden_states = jax.random.normal(k_x, (B, S, H), jnp.float32)
    params = init_params(k_p, H, E, I)
    kparams = prepare_kernel_params(params)

    fwd = jax.jit(functools.partial(moe_layer_forward, top_k=K))
    output, stats = fwd(hidden_states, kparams)
    output = jax.block_until_ready(output)

    # correctness check against pure-JAX reference (same bf16 weights)
    x_flat = hidden_states.reshape(B * S, H)
    logits = x_flat @ params["gate_w"]
    probs = jax.nn.softmax(logits, axis=-1)
    top_vals, top_idx = jax.lax.top_k(probs, K)
    combine = jnp.zeros((B * S, E)).at[jnp.arange(B * S)[:, None], top_idx].set(top_vals)
    ref = _reference_moe(x_flat, jnp.transpose(combine)[..., None],
                         kparams["wg"], kparams["wu"], kparams["wd"]).reshape(B, S, H)
    np.testing.assert_allclose(np.asarray(output), np.asarray(ref), rtol=2e-2, atol=2e-2)

    print("KERNEL_OK")
</pallas_src>

<mosaic_0001>
module attributes {stable_mosaic.version = 11 : i64} {
  func.func @_moe_expert_kernel(%arg0: i32, %arg1: i32, %arg2: i32, %arg3: memref<2x4xi32, #tpu.memory_space<smem>>, %arg4: memref<2x4xi32, #tpu.memory_space<smem>>, %arg5: memref<8x32xbf16, #tpu.memory_space<vmem>>, %arg6: memref<1x32x128xbf16, #tpu.memory_space<vmem>>, %arg7: memref<1x32x128xbf16, #tpu.memory_space<vmem>>, %arg8: memref<1x128x32xbf16, #tpu.memory_space<vmem>>, %arg9: memref<1x8x1xf32, #tpu.memory_space<vmem>>, %arg10: memref<8x32xf32, #tpu.memory_space<vmem>>) attributes {dimension_semantics = [#tpu.dimension_semantics<parallel>, #tpu.dimension_semantics<arbitrary>, #tpu.dimension_semantics<arbitrary>], iteration_bounds = array<i64: 2, 4, 1>, scalar_prefetch = 2 : i64, scratch_operands = 0 : i64, tpu.core_type = #tpu.core_type<tc>, window_params = [{transform_indices = @transform_0, window_bounds = array<i64: 8, 32>}, {transform_indices = @transform_1, window_bounds = array<i64: 1, 32, 128>}, {transform_indices = @transform_2, window_bounds = array<i64: 1, 32, 128>}, {transform_indices = @transform_3, window_bounds = array<i64: 1, 128, 32>}, {transform_indices = @transform_4, window_bounds = array<i64: 1, 8, 1>}, {transform_indices = @transform_5, window_bounds = array<i64: 8, 32>}]} {
    %c0_i32 = arith.constant 0 : i32
    %0 = arith.cmpi eq, %arg1, %c0_i32 : i32
    %c0_i32_0 = arith.constant 0 : i32
    %1 = arith.cmpi eq, %arg2, %c0_i32_0 : i32
    %2 = arith.andi %0, %1 : i1
    %3 = arith.extui %2 : i1 to i32
    %c0_i32_1 = arith.constant 0 : i32
    %4 = arith.cmpi ne, %3, %c0_i32_1 : i32
    scf.if %4 {
      %cst = arith.constant 0.000000e+00 : f32
      %11 = vector.broadcast %cst : f32 to vector<8x32xf32>
      %c0 = arith.constant 0 : index
      %c0_4 = arith.constant 0 : index
      %12 = vector.load %arg10[%c0, %c0_4] : memref<8x32xf32, #tpu.memory_space<vmem>>, vector<8x32xf32>
      tpu.vector_store %arg10[%c0, %c0_4], %11 {strides = array<i32>} : memref<8x32xf32, #tpu.memory_space<vmem>>, vector<8x32xf32>,
    } else {
    }
    %5 = arith.index_cast %arg0 : i32 to index
    %6 = arith.index_cast %arg1 : i32 to index
    %7 = memref.load %arg3[%5, %6] : memref<2x4xi32, #tpu.memory_space<smem>>
    %c0_i32_2 = arith.constant 0 : i32
    %8 = arith.cmpi ne, %7, %c0_i32_2 : i32
    %9 = arith.extui %8 : i1 to i32
    %c0_i32_3 = arith.constant 0 : i32
    %10 = arith.cmpi ne, %9, %c0_i32_3 : i32
    scf.if %10 {
      %c0 = arith.constant 0 : index
      %c0_4 = arith.constant 0 : index
      %11 = vector.load %arg5[%c0, %c0_4] : memref<8x32xbf16, #tpu.memory_space<vmem>>, vector<8x32xbf16>
      %c0_5 = arith.constant 0 : index
      %c0_6 = arith.constant 0 : index
      %c0_7 = arith.constant 0 : index
      %12 = vector.load %arg6[%c0_5, %c0_6, %c0_7] : memref<1x32x128xbf16, #tpu.memory_space<vmem>>, vector<1x32x128xbf16>
      %13 = vector.shape_cast %12 : vector<1x32x128xbf16> to vector<32x128xbf16>
      %cst = arith.constant dense<0.000000e+00> : vector<8x128xf32>
      %14 = tpu.matmul %11, %13, %cst {dimension_numbers = #tpu.dot_dimension_numbers<[1], [0], [0], [1], [0, 0, 1, 1], [], []>} : vector<8x32xbf16>, vector<32x128xbf16>, vector<8x128xf32> -> vector<8x128xf32>
      %c0_8 = arith.constant 0 : index
      %c0_9 = arith.constant 0 : index
      %c0_10 = arith.constant 0 : index
      %15 = vector.load %arg7[%c0_8, %c0_9, %c0_10] : memref<1x32x128xbf16, #tpu.memory_space<vmem>>, vector<1x32x128xbf16>
      %16 = vector.shape_cast %15 : vector<1x32x128xbf16> to vector<32x128xbf16>
      %cst_11 = arith.constant dense<0.000000e+00> : vector<8x128xf32>
      %17 = tpu.matmul %11, %16, %cst_11 {dimension_numbers = #tpu.dot_dimension_numbers<[1], [0], [0], [1], [0, 0, 1, 1], [], []>} : vector<8x32xbf16>, vector<32x128xbf16>, vector<8x128xf32> -> vector<8x128xf32>
      %18 = arith.negf %14 : vector<8x128xf32>
      %19 = math.exp %18 : vector<8x128xf32>
      %cst_12 = arith.constant 1.000000e+00 : f32
      %20 = vector.broadcast %cst_12 : f32 to vector<8x128xf32>
      %21 = arith.addf %20, %19 : vector<8x128xf32>
      %22 = arith.divf %20, %21 : vector<8x128xf32>
      %23 = arith.mulf %14, %22 : vector<8x128xf32>
      %24 = arith.mulf %23, %17 : vector<8x128xf32>
      %25 = arith.truncf %24 : vector<8x128xf32> to vector<8x128xbf16>
      %c0_13 = arith.constant 0 : index
      %c0_14 = arith.constant 0 : index
      %c0_15 = arith.constant 0 : index
      %26 = vector.load %arg8[%c0_13, %c0_14, %c0_15] : memref<1x128x32xbf16, #tpu.memory_space<vmem>>, vector<1x128x32xbf16>
      %27 = vector.shape_cast %26 : vector<1x128x32xbf16> to vector<128x32xbf16>
      %cst_16 = arith.constant dense<0.000000e+00> : vector<8x32xf32>
      %28 = tpu.matmul %25, %27, %cst_16 {dimension_numbers = #tpu.dot_dimension_numbers<[1], [0], [0], [1], [0, 0, 1, 1], [], []>} : vector<8x128xbf16>, vector<128x32xbf16>, vector<8x32xf32> -> vector<8x32xf32>
      %c0_17 = arith.constant 0 : index
      %c0_18 = arith.constant 0 : index
      %29 = vector.load %arg10[%c0_17, %c0_18] : memref<8x32xf32, #tpu.memory_space<vmem>>, vector<8x32xf32>
      %c0_19 = arith.constant 0 : index
      %c0_20 = arith.constant 0 : index
      %c0_21 = arith.constant 0 : index
      %30 = vector.load %arg9[%c0_19, %c0_20, %c0_21] : memref<1x8x1xf32, #tpu.memory_space<vmem>>, vector<1x8x1xf32>
      %31 = vector.shape_cast %30 : vector<1x8x1xf32> to vector<8x1xf32>
      %32 = vector.broadcast %31 : vector<8x1xf32> to vector<8x32xf32>
      %33 = arith.mulf %32, %28 : vector<8x32xf32>
      %34 = arith.addf %29, %33 : vector<8x32xf32>
      %c0_22 = arith.constant 0 : index
      %c0_23 = arith.constant 0 : index
      %35 = vector.load %arg10[%c0_22, %c0_23] : memref<8x32xf32, #tpu.memory_space<vmem>>, vector<8x32xf32>
      tpu.vector_store %arg10[%c0_22, %c0_23], %34 {strides = array<i32>} : memref<8x32xf32, #tpu.memory_space<vmem>>, vector<8x32xf32>,
    } else {
    }
    return
  }
  func.func @transform_0(%arg0: i32, %arg1: i32, %arg2: i32, %arg3: memref<2x4xi32, #tpu.memory_space<smem>>, %arg4: memref<2x4xi32, #tpu.memory_space<smem>>) -> (i32, i32) {
    %c0_i32 = arith.constant 0 : i32
    %c0_i32_0 = arith.constant 0 : i32
    return %arg0, %c0_i32 : i32, i32
  }
  func.func @transform_1(%arg0: i32, %arg1: i32, %arg2: i32, %arg3: memref<2x4xi32, #tpu.memory_space<smem>>, %arg4: memref<2x4xi32, #tpu.memory_space<smem>>) -> (i32, i32, i32) {
    %0 = arith.index_cast %arg0 : i32 to index
    %1 = arith.index_cast %arg1 : i32 to index
    %2 = memref.load %arg3[%0, %1] : memref<2x4xi32, #tpu.memory_space<smem>>
    %3 = arith.index_cast %arg0 : i32 to index
    %4 = arith.index_cast %arg1 : i32 to index
    %5 = memref.load %arg4[%3, %4] : memref<2x4xi32, #tpu.memory_space<smem>>
    %6 = arith.muli %2, %arg2 : i32
    %c1_i32 = arith.constant 1 : i32
    %7 = arith.subi %c1_i32, %2 : i32
    %c0_i32 = arith.constant 0 : i32
    %8 = arith.muli %7, %c0_i32 : i32
    %9 = arith.addi %6, %8 : i32
    %c0_i32_0 = arith.constant 0 : i32
    %c0_i32_1 = arith.constant 0 : i32
    return %5, %c0_i32_0, %9 : i32, i32, i32
  }
  func.func @transform_2(%arg0: i32, %arg1: i32, %arg2: i32, %arg3: memref<2x4xi32, #tpu.memory_space<smem>>, %arg4: memref<2x4xi32, #tpu.memory_space<smem>>) -> (i32, i32, i32) {
    %0 = arith.index_cast %arg0 : i32 to index
    %1 = arith.index_cast %arg1 : i32 to index
    %2 = memref.load %arg3[%0, %1] : memref<2x4xi32, #tpu.memory_space<smem>>
    %3 = arith.index_cast %arg0 : i32 to index
    %4 = arith.index_cast %arg1 : i32 to index
    %5 = memref.load %arg4[%3, %4] : memref<2x4xi32, #tpu.memory_space<smem>>
    %6 = arith.muli %2, %arg2 : i32
    %c1_i32 = arith.constant 1 : i32
    %7 = arith.subi %c1_i32, %2 : i32
    %c0_i32 = arith.constant 0 : i32
    %8 = arith.muli %7, %c0_i32 : i32
    %9 = arith.addi %6, %8 : i32
    %c0_i32_0 = arith.constant 0 : i32
    %c0_i32_1 = arith.constant 0 : i32
    return %5, %c0_i32_0, %9 : i32, i32, i32
  }
  func.func @transform_3(%arg0: i32, %arg1: i32, %arg2: i32, %arg3: memref<2x4xi32, #tpu.memory_space<smem>>, %arg4: memref<2x4xi32, #tpu.memory_space<smem>>) -> (i32, i32, i32) {
    %0 = arith.index_cast %arg0 : i32 to index
    %1 = arith.index_cast %arg1 : i32 to index
    %2 = memref.load %arg3[%0, %1] : memref<2x4xi32, #tpu.memory_space<smem>>
    %3 = arith.index_cast %arg0 : i32 to index
    %4 = arith.index_cast %arg1 : i32 to index
    %5 = memref.load %arg4[%3, %4] : memref<2x4xi32, #tpu.memory_space<smem>>
    %6 = arith.muli %2, %arg2 : i32
    %c1_i32 = arith.constant 1 : i32
    %7 = arith.subi %c1_i32, %2 : i32
    %c0_i32 = arith.constant 0 : i32
    %8 = arith.muli %7, %c0_i32 : i32
    %9 = arith.addi %6, %8 : i32
    %c0_i32_0 = arith.constant 0 : i32
    %c0_i32_1 = arith.constant 0 : i32
    return %5, %9, %c0_i32_0 : i32, i32, i32
  }
  func.func @transform_4(%arg0: i32, %arg1: i32, %arg2: i32, %arg3: memref<2x4xi32, #tpu.memory_space<smem>>, %arg4: memref<2x4xi32, #tpu.memory_space<smem>>) -> (i32, i32, i32) {
    %c0_i32 = arith.constant 0 : i32
    %c0_i32_0 = arith.constant 0 : i32
    return %arg1, %arg0, %c0_i32 : i32, i32, i32
  }
  func.func @transform_5(%arg0: i32, %arg1: i32, %arg2: i32, %arg3: memref<2x4xi32, #tpu.memory_space<smem>>, %arg4: memref<2x4xi32, #tpu.memory_space<smem>>) -> (i32, i32) {
    %c0_i32 = arith.constant 0 : i32
    %c0_i32_0 = arith.constant 0 : i32
    return %arg0, %c0_i32 : i32, i32
  }
}

</mosaic_0001>

<llo_original>
// kernel: custom-call.2
$region0: #{custom-call.2}
  %s0 = inlined_call_operand.vmem [shape: s32[8], index: 0, kind: output, shape index: {}]

// kernel: moe_layer_forward.1
$region0: #{moe_layer_forward.1}
  #allocation0 [shape = 'u32[]', space=smem, size = 0x4, offset = 0x4, fixed_abs, tag = 'smem constant byte address 0x4 - core index']
  #allocation1 [shape = 'u32[144,128]{1,0:T(1,128)}', space=vmem, size = 0x12000, scoped, tag = 'internal scratch']
  #allocation2 [shape = 's32[1]{0}', space=sflag, size = 0x4, scoped, tag = 'scoped memory for moe_layer_forward.1']
  #allocation3 [shape = 'u8[1024]{0}', space=smem, size = 0x400, scoped, tag = 'prefetched SMEM operand 0']
  #allocation4 [shape = 'u8[1024]{0}', space=smem, size = 0x400, scoped, tag = 'prefetched SMEM operand 1']
  %s0 = inlined_call_operand.vmem [shape: s32[2,4], index: 0, kind: input, shape index: {}]
  %s1 = inlined_call_operand.vmem [shape: s32[2,4], index: 1, kind: input, shape index: {}]
  %s2 = inlined_call_operand.vmem [shape: bf16[16,32], index: 2, kind: input, shape index: {}]
  %s3 = inlined_call_operand.vmem [shape: bf16[4,32,128], index: 3, kind: input, shape index: {}]
  %s4 = inlined_call_operand.vmem [shape: bf16[4,32,128], index: 4, kind: input, shape index: {}]
  %s5 = inlined_call_operand.vmem [shape: bf16[4,128,32], index: 5, kind: input, shape index: {}]
  %s6 = inlined_call_operand.vmem [shape: f32[4,16,1], index: 6, kind: input, shape index: {}]
  %s7 = inlined_call_operand.hbm [shape: f32[16,32], index: 7, kind: output, shape index: {}]
  %s8 = sld [smem:[#allocation0]]
  $region61: #{moe_layer_forward.1} parent=0
    _
  %s10 = ssub.s32 1, %s8
  %s11 = scalar_select 0, %s10, %s8
  %s12 = sshll.u32 %s0, 4
  %s13 = int_to_ptr.vmem [resolvable:$true] %s12
  %15 = dma.vmem_to_smem %s13, 32, [#allocation3], [#allocation2]
  %s16 = sshll.u32 %s1, 4
  %s17 = int_to_ptr.vmem [resolvable:$true] %s16
  %19 = dma.vmem_to_smem %s17, 32, [#allocation4], [#allocation2]
  %20 = dma.done [#allocation2], 64
  %21 = sfence
  $region1: #{moe_layer_forward.1} parent=0
    #allocation5 [shape = 'u8[8192]{0}', space=vmem, size = 0x2000, scoped, tag = 'output window, operand 0']
    #allocation6 [shape = 's32[2]{0}', space=sflag, size = 0x8, scoped, tag = 'scoped memory for moe_layer_forward.1']
    %22 = vsyncpa [#allocation6], 0
    %s23 = scalar_lea.sflag [#allocation6], 1
    %24 = vsyncpa %s23, 0
    loop: start=0, step=1, limit=10
    $region2: #{moe_layer_forward.1} parent=1 // loop_pre_header
      _
    $region3: #{moe_layer_forward.1} parent=1 // loop_header
      %s26 = sphi 0, %s30
      %p27 = scmp.ge.s32.totalorder %s26, 10
      %s33 = sphi 0, %s52
      %s34 = sphi 0, %s48
      %s35 = sphi 0, %s44
      %s36 = sphi 0, %s33
      %s37 = sphi 0, %s34
      %s38 = sphi 0, %s35
      %s39 = sphi 0, %s36
      %s40 = sphi 0, %s37
      %s41 = sphi 0, %s38
      %s55 = sphi 0, %s57
      %s58 = sphi 0, %s55
      %s59 = sphi 0, %s58
      %s75 = sphi 0, %s59
      %s103 = sphi 0, %s105
      %s106 = sphi 0, %s103
      %s107 = sphi 0, %s106
      %s123 = sphi 0, %s107
      %s151 = sphi 0, %s153
      %s154 = sphi 0, %s151
      %s155 = sphi 0, %s154
      %s171 = sphi 0, %s155
      %s199 = sphi 0, %s201
      %s202 = sphi 0, %s199
      %s203 = sphi 0, %s202
      %s219 = sphi 0, %s203
      %s227 = sphi 0, %s229
      %s230 = sphi 0, %s227
      %s231 = sphi 0, %s230
      %s247 = sphi 0, %s231
      %s253 = sphi 0, %s255
      %s256 = sphi 0, %s253
      %s257 = sphi 0, %s256
      %s273 = sphi 0, %s257
    $region4: #{moe_layer_forward.1} parent=1 // loop_header_branch
      %29 = sbr.rel (%p27) target = $region8
    $region5: #{moe_layer_forward.1} parent=1 // loop_body
      %s31 = ssub.s32 %s26, 1
      %s32 = ssub.s32 %s26, 2
      %s42 = sadd.s32 1, %s35
      %p43 = scmp.ge.s32.totalorder %s42, 1
      %s44 = scalar_select %p43, 0, %s42
      %s45 = sadd.s32 1, %s34
      %s46 = scalar_select %p43, %s45, %s34
      %p47 = scmp.ge.s32.totalorder %s46, 4
      %s48 = scalar_select %p47, 0, %s46
      %s49 = sadd.s32 1, %s33
      %s50 = scalar_select %p47, %s49, %s33
      %p51 = scmp.ge.s32.totalorder %s50, 2
      %s52 = scalar_select %p51, 0, %s50
      %s53 = ssub.s32 %s33, %s52
      %p54 = scmp.eq.s32.totalorder %s53, 0
      %s56 = sadd.s32 %s55, 1
      %s57 = scalar_select %p54, %s55, %s56
      %p60 = pneg %p54
      %p61 = scmp.eq.s32.totalorder %s26, 7
      %p62 = por %p60, %p61
      %p63 = scmp.ne.s32.totalorder %s55, %s58
      %p64 = scmp.eq.s32.totalorder %s26, 0
      %p65 = por %p63, %p64
      %p66 = scmp.ne.s32.totalorder %s55, %s58
      %p67 = scmp.eq.s32.totalorder %s31, 7
      %p68 = por %p66, %p67
      %p69 = scmp.ne.s32.totalorder %s58, %s59
      %p70 = scmp.eq.s32.totalorder %s31, 0
      %p71 = por %p69, %p70
      %p72 = scmp.ne.s32.totalorder %s58, %s59
      %p73 = scmp.eq.s32.totalorder %s32, 7
      %p74 = por %p72, %p73
      %p76 = scmp.ne.s32.totalorder %s59, %s75
      %p77 = scmp.eq.s32.totalorder %s32, 0
      %p78 = por %p76, %p77
      %s79 = sshra.s32 %s34, 7
      %s80 = sand.u32 %s34, 127
      %s81 = sadd.s32 %s79, %s33
      %s82 = smul.u32 %s81, 128
      %s83 = sshra.s32 %s34, 7
      %s84 = sand.u32 %s34, 127
      %s85 = sadd.s32 %s82, %s84
      %s86 = sld [smem:[#allocation3 + %s85]]
      %s87 = sld [smem:[#allocation4 + %s85]]
      %s88 = smul.u32 %s86, %s35
      %s89 = sshra.s32 %s48, 7
      %s90 = sand.u32 %s48, 127
      %s91 = sadd.s32 %s89, %s52
      %s92 = smul.u32 %s91, 128
      %s93 = sshra.s32 %s48, 7
      %s94 = sand.u32 %s48, 127
      %s95 = sadd.s32 %s92, %s94
      %s96 = sld [smem:[#allocation3 + %s95]]
      %s97 = sld [smem:[#allocation4 + %s95]]
      %s98 = smul.u32 %s96, %s44
      %s99 = ssub.s32 %s87, %s97
      %s100 = ssub.s32 %s88, %s98
      %s101 = sor.u32 %s99, %s100
      %p102 = scmp.eq.s32.totalorder %s101, 0
      %s104 = sadd.s32 %s103, 1
      %s105 = scalar_select %p102, %s103, %s104
      %p108 = pneg %p102
      %p109 = scmp.eq.s32.totalorder %s26, 7
      %p110 = por %p108, %p109
      %p111 = scmp.ne.s32.totalorder %s103, %s106
      %p112 = scmp.eq.s32.totalorder %s26, 0
      %p113 = por %p111, %p112
      %p114 = scmp.ne.s32.totalorder %s103, %s106
      %p115 = scmp.eq.s32.totalorder %s31, 7
      %p116 = por %p114, %p115
      %p117 = scmp.ne.s32.totalorder %s106, %s107
      %p118 = scmp.eq.s32.totalorder %s31, 0
      %p119 = por %p117, %p118
      %p120 = scmp.ne.s32.totalorder %s106, %s107
      %p121 = scmp.eq.s32.totalorder %s32, 7
      %p122 = por %p120, %p121
      %p124 = scmp.ne.s32.totalorder %s107, %s123
      %p125 = scmp.eq.s32.totalorder %s32, 0
      %p126 = por %p124, %p125
      %s127 = sshra.s32 %s34, 7
      %s128 = sand.u32 %s34, 127
      %s129 = sadd.s32 %s127, %s33
      %s130 = smul.u32 %s129, 128
      %s131 = sshra.s32 %s34, 7
      %s132 = sand.u32 %s34, 127
      %s133 = sadd.s32 %s130, %s132
      %s134 = sld [smem:[#allocation3 + %s133]]
      %s135 = sld [smem:[#allocation4 + %s133]]
      %s136 = smul.u32 %s134, %s35
      %s137 = sshra.s32 %s48, 7
      %s138 = sand.u32 %s48, 127
      %s139 = sadd.s32 %s137, %s52
      %s140 = smul.u32 %s139, 128
      %s141 = sshra.s32 %s48, 7
      %s142 = sand.u32 %s48, 127
      %s143 = sadd.s32 %s140, %s142
      %s144 = sld [smem:[#allocation3 + %s143]]
      %s145 = sld [smem:[#allocation4 + %s143]]
      %s146 = smul.u32 %s144, %s44
      %s147 = ssub.s32 %s135, %s145
      %s148 = ssub.s32 %s136, %s146
      %s149 = sor.u32 %s147, %s148
      %p150 = scmp.eq.s32.totalorder %s149, 0
      %s152 = sadd.s32 %s151, 1
      %s153 = scalar_select %p150, %s151, %s152
      %p156 = pneg %p150
      %p157 = scmp.eq.s32.totalorder %s26, 7
      %p158 = por %p156, %p157
      %p159 = scmp.ne.s32.totalorder %s151, %s154
      %p160 = scmp.eq.s32.totalorder %s26, 0
      %p161 = por %p159, %p160
      %p162 = scmp.ne.s32.totalorder %s151, %s154
      %p163 = scmp.eq.s32.totalorder %s31, 7
      %p164 = por %p162, %p163
      %p165 = scmp.ne.s32.totalorder %s154, %s155
      %p166 = scmp.eq.s32.totalorder %s31, 0
      %p167 = por %p165, %p166
      %p168 = scmp.ne.s32.totalorder %s154, %s155
      %p169 = scmp.eq.s32.totalorder %s32, 7
      %p170 = por %p168, %p169
      %p172 = scmp.ne.s32.totalorder %s155, %s171
      %p173 = scmp.eq.s32.totalorder %s32, 0
      %p174 = por %p172, %p173
      %s175 = sshra.s32 %s34, 7
      %s176 = sand.u32 %s34, 127
      %s177 = sadd.s32 %s175, %s33
      %s178 = smul.u32 %s177, 128
      %s179 = sshra.s32 %s34, 7
      %s180 = sand.u32 %s34, 127
      %s181 = sadd.s32 %s178, %s180
      %s182 = sld [smem:[#allocation3 + %s181]]
      %s183 = sld [smem:[#allocation4 + %s181]]
      %s184 = smul.u32 %s182, %s35
      %s185 = sshra.s32 %s48, 7
      %s186 = sand.u32 %s48, 127
      %s187 = sadd.s32 %s185, %s52
      %s188 = smul.u32 %s187, 128
      %s189 = sshra.s32 %s48, 7
      %s190 = sand.u32 %s48, 127
      %s191 = sadd.s32 %s188, %s190
      %s192 = sld [smem:[#allocation3 + %s191]]
      %s193 = sld [smem:[#allocation4 + %s191]]
      %s194 = smul.u32 %s192, %s44
      %s195 = ssub.s32 %s183, %s193
      %s196 = ssub.s32 %s184, %s194
      %s197 = sor.u32 %s195, %s196
      %p198 = scmp.eq.s32.totalorder %s197, 0
      %s200 = sadd.s32 %s199, 1
      %s201 = scalar_select %p198, %s199, %s200
      %p204 = pneg %p198
      %p205 = scmp.eq.s32.totalorder %s26, 7
      %p206 = por %p204, %p205
      %p207 = scmp.ne.s32.totalorder %s199, %s202
      %p208 = scmp.eq.s32.totalorder %s26, 0
      %p209 = por %p207, %p208
      %p210 = scmp.ne.s32.totalorder %s199, %s202
      %p211 = scmp.eq.s32.totalorder %s31, 7
      %p212 = por %p210, %p211
      %p213 = scmp.ne.s32.totalorder %s202, %s203
      %p214 = scmp.eq.s32.totalorder %s31, 0
      %p215 = por %p213, %p214
      %p216 = scmp.ne.s32.totalorder %s202, %s203
      %p217 = scmp.eq.s32.totalorder %s32, 7
      %p218 = por %p216, %p217
      %p220 = scmp.ne.s32.totalorder %s203, %s219
      %p221 = scmp.eq.s32.totalorder %s32, 0
      %p222 = por %p220, %p221
      %s223 = ssub.s32 %s34, %s48
      %s224 = ssub.s32 %s33, %s52
      %s225 = sor.u32 %s223, %s224
      %p226 = scmp.eq.s32.totalorder %s225, 0
      %s228 = sadd.s32 %s227, 1
      %s229 = scalar_select %p226, %s227, %s228
      %p232 = pneg %p226
      %p233 = scmp.eq.s32.totalorder %s26, 7
      %p234 = por %p232, %p233
      %p235 = scmp.ne.s32.totalorder %s227, %s230
      %p236 = scmp.eq.s32.totalorder %s26, 0
      %p237 = por %p235, %p236
      %p238 = scmp.ne.s32.totalorder %s227, %s230
      %p239 = scmp.eq.s32.totalorder %s31, 7
      %p240 = por %p238, %p239
      %p241 = scmp.ne.s32.totalorder %s230, %s231
      %p242 = scmp.eq.s32.totalorder %s31, 0
      %p243 = por %p241, %p242
      %p244 = scmp.ne.s32.totalorder %s230, %s231
      %p245 = scmp.eq.s32.totalorder %s32, 7
      %p246 = por %p244, %p245
      %p248 = scmp.ne.s32.totalorder %s231, %s247
      %p249 = scmp.eq.s32.totalorder %s32, 0
      %p250 = por %p248, %p249
      %s251 = ssub.s32 %s33, %s52
      %p252 = scmp.eq.s32.totalorder %s251, 0
      %s254 = sadd.s32 %s253, 1
      %s255 = scalar_select %p252, %s253, %s254
      %p258 = pneg %p252
      %p259 = scmp.eq.s32.totalorder %s26, 7
      %p260 = por %p258, %p259
      %p261 = scmp.ne.s32.totalorder %s253, %s256
      %p262 = scmp.eq.s32.totalorder %s26, 0
      %p263 = por %p261, %p262
      %p264 = scmp.ne.s32.totalorder %s253, %s256
      %p265 = scmp.eq.s32.totalorder %s31, 7
      %p266 = por %p264, %p265
      %p267 = scmp.ne.s32.totalorder %s256, %s257
      %p268 = scmp.eq.s32.totalorder %s31, 0
      %p269 = por %p267, %p268
      %p270 = scmp.ne.s32.totalorder %s256, %s257
      %p271 = scmp.eq.s32.totalorder %s32, 7
      %p272 = por %p270, %p271
      %p274 = scmp.ne.s32.totalorder %s257, %s273
      %p275 = scmp.eq.s32.totalorder %s32, 0
      %p276 = por %p274, %p275
      %p277 = scmp.le.s32.totalorder 1, %s26
      %p278 = scmp.lt.s32.totalorder %s26, 9
      %p279 = pnand %p277, %p278
      %p280 = pneg %p279
      // Predicated region
      $region9: #{moe_layer_forward.1} parent=5 // pred_check
        _
      $region10: #{moe_layer_forward.1} parent=5 // pred_check_branch
        %282 = sbr.rel (%p279) target = $region12
      $region11: #{moe_layer_forward.1} parent=5 // pred_region
        %s283 = ssub.s32 %s26, 1
      $region12: #{moe_layer_forward.1} parent=5 // pred_fallthru
        _
      %p284 = scmp.lt.s32.totalorder %s26, 8
      // Predicated region
      $region13: #{moe_layer_forward.1} parent=5 // pred_check
        %p285 = pneg %p284
      $region14: #{moe_layer_forward.1} parent=5 // pred_check_branch
        %287 = sbr.rel (%p285) target = $region16
      $region15: #{moe_layer_forward.1} parent=5 // pred_region
        // Predicated region
        $region17: #{moe_layer_forward.1} parent=15 // pred_check
          %p288 = pneg %p65
        $region18: #{moe_layer_forward.1} parent=15 // pred_check_branch
          %290 = sbr.rel (%p288) target = $region20
        $region19: #{moe_layer_forward.1} parent=15 // pred_region
          %p291 = scmp.lt.s32.totalorder %s33, 1
          %s292 = scalar_select %p291, %s33, 1
          %s293 = smul.addr %s292, 4
          %s294 = scalar_lea.vmem %s2, %s293
        $region20: #{moe_layer_forward.1} parent=15 // pred_fallthru
          _
        // Predicated region
        $region21: #{moe_layer_forward.1} parent=15 // pred_check
          %p295 = pneg %p113
        $region22: #{moe_layer_forward.1} parent=15 // pred_check_branch
          %297 = sbr.rel (%p295) target = $region24
        $region23: #{moe_layer_forward.1} parent=15 // pred_region
          %s298 = sshra.s32 %s34, 7
          %s299 = sand.u32 %s34, 127
          %s300 = sadd.s32 %s298, %s33
          %s301 = smul.u32 %s300, 128
          %s302 = sshra.s32 %s34, 7
          %s303 = sand.u32 %s34, 127
          %s304 = sadd.s32 %s301, %s303
          %s305 = sld [smem:[#allocation3 + %s304]]
          %s306 = sld [smem:[#allocation4 + %s304]]
          %s307 = smul.u32 %s305, %s35
          %p308 = scmp.lt.s32.totalorder %s306, 3
          %s309 = scalar_select %p308, %s306, 3
          %p310 = scmp.lt.s32.totalorder %s307, 0
          %s311 = scalar_select %p310, %s307, 0
          %s312 = smul.addr %s309, 4
          %s313 = sadd.s32 %s311, %s312
          %s314 = smul.addr %s313, 4
          %s315 = scalar_lea.vmem %s3, %s314
          %s316 = sshra.s32 %s34, 7
          %s317 = sand.u32 %s34, 127
          %s318 = sadd.s32 %s316, %s33
          %s319 = smul.u32 %s318, 128
          %s320 = sshra.s32 %s34, 7
          %s321 = sand.u32 %s34, 127
          %s322 = sadd.s32 %s319, %s321
          %s323 = sld [smem:[#allocation3 + %s322]]
          %s324 = sld [smem:[#allocation4 + %s322]]
          %s325 = smul.u32 %s323, %s35
        $region24: #{moe_layer_forward.1} parent=15 // pred_fallthru
          _
        // Predicated region
        $region25: #{moe_layer_forward.1} parent=15 // pred_check
          %p326 = pneg %p161
        $region26: #{moe_layer_forward.1} parent=15 // pred_check_branch
          %328 = sbr.rel (%p326) target = $region28
        $region27: #{moe_layer_forward.1} parent=15 // pred_region
          %s329 = sshra.s32 %s34, 7
          %s330 = sand.u32 %s34, 127
          %s331 = sadd.s32 %s329, %s33
          %s332 = smul.u32 %s331, 128
          %s333 = sshra.s32 %s34, 7
          %s334 = sand.u32 %s34, 127
          %s335 = sadd.s32 %s332, %s334
          %s336 = sld [smem:[#allocation3 + %s335]]
          %s337 = sld [smem:[#allocation4 + %s335]]
          %s338 = smul.u32 %s336, %s35
          %p339 = scmp.lt.s32.totalorder %s337, 3
          %s340 = scalar_select %p339, %s337, 3
          %p341 = scmp.lt.s32.totalorder %s338, 0
          %s342 = scalar_select %p341, %s338, 0
          %s343 = smul.addr %s340, 4
          %s344 = sadd.s32 %s342, %s343
          %s345 = smul.addr %s344, 4
          %s346 = scalar_lea.vmem %s4, %s345
          %s347 = sshra.s32 %s34, 7
          %s348 = sand.u32 %s34, 127
          %s349 = sadd.s32 %s347, %s33
          %s350 = smul.u32 %s349, 128
          %s351 = sshra.s32 %s34, 7
          %s352 = sand.u32 %s34, 127
          %s353 = sadd.s32 %s350, %s352
          %s354 = sld [smem:[#allocation3 + %s353]]
          %s355 = sld [smem:[#allocation4 + %s353]]
          %s356 = smul.u32 %s354, %s35
        $region28: #{moe_layer_forward.1} parent=15 // pred_fallthru
          _
        // Predicated region
        $region29: #{moe_layer_forward.1} parent=15 // pred_check
          %p357 = pneg %p209
        $region30: #{moe_layer_forward.1} parent=15 // pred_check_branch
          %359 = sbr.rel (%p357) target = $region32
        $region31: #{moe_layer_forward.1} parent=15 // pred_region
          %s360 = sshra.s32 %s34, 7
          %s361 = sand.u32 %s34, 127
          %s362 = sadd.s32 %s360, %s33
          %s363 = smul.u32 %s362, 128
          %s364 = sshra.s32 %s34, 7
          %s365 = sand.u32 %s34, 127
          %s366 = sadd.s32 %s363, %s365
          %s367 = sld [smem:[#allocation3 + %s366]]
          %s368 = sld [smem:[#allocation4 + %s366]]
          %s369 = smul.u32 %s367, %s35
          %s370 = smul.u32 16, %s369
          %p371 = scmp.lt.s32.totalorder %s368, 3
          %s372 = scalar_select %p371, %s368, 3
          %p373 = scmp.lt.s32.totalorder %s370, 15
          %s374 = scalar_select %p373, %s370, 15
          %s375 = smul.addr %s372, 16
          %s376 = sadd.s32 %s374, %s375
          %s377 = smul.addr %s376, 4
          %s378 = scalar_lea.vmem %s5, %s377
          %s379 = sshra.s32 %s34, 7
          %s380 = sand.u32 %s34, 127
          %s381 = sadd.s32 %s379, %s33
          %s382 = smul.u32 %s381, 128
          %s383 = sshra.s32 %s34, 7
          %s384 = sand.u32 %s34, 127
          %s385 = sadd.s32 %s382, %s384
          %s386 = sld [smem:[#allocation3 + %s385]]
          %s387 = sld [smem:[#allocation4 + %s385]]
          %s388 = smul.u32 %s386, %s35
          %s389 = smul.u32 16, %s388
        $region32: #{moe_layer_forward.1} parent=15 // pred_fallthru
          _
        // Predicated region
        $region33: #{moe_layer_forward.1} parent=15 // pred_check
          %p390 = pneg %p237
        $region34: #{moe_layer_forward.1} parent=15 // pred_check_branch
          %392 = sbr.rel (%p390) target = $region36
        $region35: #{moe_layer_forward.1} parent=15 // pred_region
          %p393 = scmp.lt.s32.totalorder %s34, 3
          %s394 = scalar_select %p393, %s34, 3
          %p395 = scmp.lt.s32.totalorder %s33, 1
          %s396 = scalar_select %p395, %s33, 1
          %s397 = smul.addr %s394, 2
          %s398 = sadd.s32 %s396, %s397
          %s399 = smul.addr %s398, 8
          %s400 = scalar_lea.vmem %s6, %s399
        $region36: #{moe_layer_forward.1} parent=15 // pred_fallthru
          _
      $region16: #{moe_layer_forward.1} parent=5 // pred_fallthru
        _
      %p401 = scmp.le.s32.totalorder 1, %s26
      %p402 = scmp.lt.s32.totalorder %s26, 9
      %p403 = pnand %p401, %p402
      %p404 = pneg %p403
      // Predicated region
      $region37: #{moe_layer_forward.1} parent=5 // pred_check
        _
      $region38: #{moe_layer_forward.1} parent=5 // pred_check_branch
        %406 = sbr.rel (%p403) target = $region40
      $region39: #{moe_layer_forward.1} parent=5 // pred_region
        %s407 = ssub.s32 %s26, 1
        %p408 = scmp.lt.s32.totalorder %s36, 1
        %s409 = scalar_select %p408, %s36, 1
        %s410 = smul.addr %s409, 4
        %s411 = scalar_lea.vmem %s2, %s410
        %p412 = pneg %p71
        %p413 = pneg %p68
        %s414 = sshra.s32 %s37, 7
        %s415 = sand.u32 %s37, 127
        %s416 = sadd.s32 %s414, %s36
        %s417 = smul.u32 %s416, 128
        %s418 = sshra.s32 %s37, 7
        %s419 = sand.u32 %s37, 127
        %s420 = sadd.s32 %s417, %s419
        %s421 = sld [smem:[#allocation3 + %s420]]
        %s422 = sld [smem:[#allocation4 + %s420]]
        %s423 = smul.u32 %s421, %s38
        %p424 = scmp.lt.s32.totalorder %s422, 3
        %s425 = scalar_select %p424, %s422, 3
        %p426 = scmp.lt.s32.totalorder %s423, 0
        %s427 = scalar_select %p426, %s423, 0
        %s428 = smul.addr %s425, 4
        %s429 = sadd.s32 %s427, %s428
        %s430 = smul.addr %s429, 4
        %s431 = scalar_lea.vmem %s3, %s430
        %p432 = pneg %p119
        %p433 = pneg %p116
        %s434 = sshra.s32 %s37, 7
        %s435 = sand.u32 %s37, 127
        %s436 = sadd.s32 %s434, %s36
        %s437 = smul.u32 %s436, 128
        %s438 = sshra.s32 %s37, 7
        %s439 = sand.u32 %s37, 127
        %s440 = sadd.s32 %s437, %s439
        %s441 = sld [smem:[#allocation3 + %s440]]
        %s442 = sld [smem:[#allocation4 + %s440]]
        %s443 = smul.u32 %s441, %s38
        %p444 = scmp.lt.s32.totalorder %s442, 3
        %s445 = scalar_select %p444, %s442, 3
        %p446 = scmp.lt.s32.totalorder %s443, 0
        %s447 = scalar_select %p446, %s443, 0
        %s448 = smul.addr %s445, 4
        %s449 = sadd.s32 %s447, %s448
        %s450 = smul.addr %s449, 4
        %s451 = scalar_lea.vmem %s4, %s450
        %p452 = pneg %p167
        %p453 = pneg %p164
        %s454 = sshra.s32 %s37, 7
        %s455 = sand.u32 %s37, 127
        %s456 = sadd.s32 %s454, %s36
        %s457 = smul.u32 %s456, 128
        %s458 = sshra.s32 %s37, 7
        %s459 = sand.u32 %s37, 127
        %s460 = sadd.s32 %s457, %s459
        %s461 = sld [smem:[#allocation3 + %s460]]
        %s462 = sld [smem:[#allocation4 + %s460]]
        %s463 = smul.u32 %s461, %s38
        %s464 = smul.u32 16, %s463
        %p465 = scmp.lt.s32.totalorder %s462, 3
        %s466 = scalar_select %p465, %s462, 3
        %p467 = scmp.lt.s32.totalorder %s464, 15
        %s468 = scalar_select %p467, %s464, 15
        %s469 = smul.addr %s466, 16
        %s470 = sadd.s32 %s468, %s469
        %s471 = smul.addr %s470, 4
        %s472 = scalar_lea.vmem %s5, %s471
        %p473 = pneg %p215
        %p474 = pneg %p212
        %p475 = scmp.lt.s32.totalorder %s37, 3
        %s476 = scalar_select %p475, %s37, 3
        %p477 = scmp.lt.s32.totalorder %s36, 1
        %s478 = scalar_select %p477, %s36, 1
        %s479 = smul.addr %s476, 2
        %s480 = sadd.s32 %s478, %s479
        %s481 = smul.addr %s480, 8
        %s482 = scalar_lea.vmem %s6, %s481
        %p483 = pneg %p243
        %p484 = pneg %p240
        %p485 = pneg %p269
        %p486 = pneg %p266
        %s487 = sand.u32 %s256, 1
        %s488 = scalar_lea.sflag [#allocation6], %s487
        %s489 = sand.u32 %s256, 1
        %s490 = smul.addr %s489, 8
        %s491 = scalar_lea.vmem [#allocation5], %s490
        %p492 = scmp.lt.s32.totalorder %s36, 1
        %s493 = scalar_select %p492, %s36, 1
        %s494 = smul.addr %s493, 4
        %s495 = scalar_lea.vmem %s2, %s494
        %s496 = sshra.s32 %s37, 7
        %s497 = sand.u32 %s37, 127
        %s498 = sadd.s32 %s496, %s36
        %s499 = smul.u32 %s498, 128
        %s500 = sshra.s32 %s37, 7
        %s501 = sand.u32 %s37, 127
        %s502 = sadd.s32 %s499, %s501
        %s503 = sld [smem:[#allocation3 + %s502]]
        %s504 = sld [smem:[#allocation4 + %s502]]
        %s505 = smul.u32 %s503, %s38
        %p506 = scmp.lt.s32.totalorder %s504, 3
        %s507 = scalar_select %p506, %s504, 3
        %p508 = scmp.lt.s32.totalorder %s505, 0
        %s509 = scalar_select %p508, %s505, 0
        %s510 = smul.addr %s507, 4
        %s511 = sadd.s32 %s509, %s510
        %s512 = smul.addr %s511, 4
        %s513 = scalar_lea.vmem %s3, %s512
        %s514 = sshra.s32 %s37, 7
        %s515 = sand.u32 %s37, 127
        %s516 = sadd.s32 %s514, %s36
        %s517 = smul.u32 %s516, 128
        %s518 = sshra.s32 %s37, 7
        %s519 = sand.u32 %s37, 127
        %s520 = sadd.s32 %s517, %s519
        %s521 = sld [smem:[#allocation3 + %s520]]
        %s522 = sld [smem:[#allocation4 + %s520]]
        %s523 = smul.u32 %s521, %s38
        %s524 = sshra.s32 %s37, 7
        %s525 = sand.u32 %s37, 127
        %s526 = sadd.s32 %s524, %s36
        %s527 = smul.u32 %s526, 128
        %s528 = sshra.s32 %s37, 7
        %s529 = sand.u32 %s37, 127
        %s530 = sadd.s32 %s527, %s529
        %s531 = sld [smem:[#allocation3 + %s530]]
        %s532 = sld [smem:[#allocation4 + %s530]]
        %s533 = smul.u32 %s531, %s38
        %p534 = scmp.lt.s32.totalorder %s532, 3
        %s535 = scalar_select %p534, %s532, 3
        %p536 = scmp.lt.s32.totalorder %s533, 0
        %s537 = scalar_select %p536, %s533, 0
        %s538 = smul.addr %s535, 4
        %s539 = sadd.s32 %s537, %s538
        %s540 = smul.addr %s539, 4
        %s541 = scalar_lea.vmem %s4, %s540
        %s542 = sshra.s32 %s37, 7
        %s543 = sand.u32 %s37, 127
        %s544 = sadd.s32 %s542, %s36
        %s545 = smul.u32 %s544, 128
        %s546 = sshra.s32 %s37, 7
        %s547 = sand.u32 %s37, 127
        %s548 = sadd.s32 %s545, %s547
        %s549 = sld [smem:[#allocation3 + %s548]]
        %s550 = sld [smem:[#allocation4 + %s548]]
        %s551 = smul.u32 %s549, %s38
        %s552 = sshra.s32 %s37, 7
        %s553 = sand.u32 %s37, 127
        %s554 = sadd.s32 %s552, %s36
        %s555 = smul.u32 %s554, 128
        %s556 = sshra.s32 %s37, 7
        %s557 = sand.u32 %s37, 127
        %s558 = sadd.s32 %s555, %s557
        %s559 = sld [smem:[#allocation3 + %s558]]
        %s560 = sld [smem:[#allocation4 + %s558]]
        %s561 = smul.u32 %s559, %s38
        %s562 = smul.u32 16, %s561
        %p563 = scmp.lt.s32.totalorder %s560, 3
        %s564 = scalar_select %p563, %s560, 3
        %p565 = scmp.lt.s32.totalorder %s562, 15
        %s566 = scalar_select %p565, %s562, 15
        %s567 = smul.addr %s564, 16
        %s568 = sadd.s32 %s566, %s567
        %s569 = smul.addr %s568, 4
        %s570 = scalar_lea.vmem %s5, %s569
        %s571 = sshra.s32 %s37, 7
        %s572 = sand.u32 %s37, 127
        %s573 = sadd.s32 %s571, %s36
        %s574 = smul.u32 %s573, 128
        %s575 = sshra.s32 %s37, 7
        %s576 = sand.u32 %s37, 127
        %s577 = sadd.s32 %s574, %s576
        %s578 = sld [smem:[#allocation3 + %s577]]
        %s579 = sld [smem:[#allocation4 + %s577]]
        %s580 = smul.u32 %s578, %s38
        %s581 = smul.u32 16, %s580
        %p582 = scmp.lt.s32.totalorder %s37, 3
        %s583 = scalar_select %p582, %s37, 3
        %p584 = scmp.lt.s32.totalorder %s36, 1
        %s585 = scalar_select %p584, %s36, 1
        %s586 = smul.addr %s583, 2
        %s587 = sadd.s32 %s585, %s586
        %s588 = smul.addr %s587, 8
        %s589 = scalar_lea.vmem %s6, %s588
        %p591 = scmp.eq.s32.totalorder %s37, 0
        %p592 = scmp.eq.s32.totalorder %s38, 0
        %p593 = pnand %p591, %p592
        %p594 = pneg %p593
        // Predicated region
        $region41: #{moe_layer_forward.1} parent=39 // pred_check
          _
        $region42: #{moe_layer_forward.1} parent=39 // pred_check_branch
          %596 = sbr.rel (%p593) target = $region44
        $region43: #{moe_layer_forward.1} parent=39 // pred_region
          %vm597 = vcmask 261120
          %598 = vst.msk [vmem:[%s491] sm:$0xff] %vm597, 0.0
        $region44: #{moe_layer_forward.1} parent=39 // pred_fallthru
          _
        %s599 = sshra.s32 %s37, 7
        %s600 = sand.u32 %s37, 127
        %s601 = sadd.s32 %s599, %s36
        %s602 = smul.u32 %s601, 128
        %s603 = sshra.s32 %s37, 7
        %s604 = sand.u32 %s37, 127
        %s605 = sadd.s32 %s602, %s604
        %s606 = sld [smem:[#allocation3 + %s605]]
        %p607 = scmp.ne.s32.totalorder %s606, 0
        // Predicated region
        $region45: #{moe_layer_forward.1} parent=39 // pred_check
          %p608 = pneg %p607
        $region46: #{moe_layer_forward.1} parent=39 // pred_check_branch
          %610 = sbr.rel (%p608) target = $region48
        $region47: #{moe_layer_forward.1} parent=39 // pred_region
          %v611 = vld [vmem:[%s495] sm:$0xf]
          %v612 = vld [vmem:[%s513] sm:$0xf]
          %v613 = vld [vmem:[%s513 + $0x4] sm:$0xf]
          %v614 = vld [vmem:[%s513 + $0x8] sm:$0xf]
          %v615 = vld [vmem:[%s513 + $0xc] sm:$0xf]
          %v620 = vunpack.c.l.b16 %v612
          %v621 = vunpack.c.l.b16 %v613
          %v622 = vunpack.c.l.b16 %v614
          %v623 = vunpack.c.l.b16 %v615
          %v624 = vpack.c.b16 %v621, %v620
          %v625 = vpack.c.b16 %v623, %v622
          %vm628 = vcmask 261120
          %v630 = vsel %vm628, %v611, 0
          %632 = vmatprep.subr.bf16.mxu0 0
          %633 = vmatpush1.bf16.msra.mxu0 %v624
          %634 = vmatprep.subr.bf16.mxu0 0
          %635 = vmatpush1.bf16.msra.mxu0 %v625
          %636 = vmatprep.subr.bf16.mxu0 0
          %637 = vmatpush1.bf16.msra.mxu0 0
          %638 = vmatprep.subr.bf16.mxu0 0
          %639 = vmatpush1.bf16.msra.mxu0 0
          %640 = vmatprep.subr.bf16.mxu0 0
          %641 = vmatpush1.bf16.msra.mxu0 0
          %642 = vmatprep.subr.bf16.mxu0 0
          %643 = vmatpush1.bf16.msra.mxu0 0
          %644 = vmatprep.subr.bf16.mxu0 0
          %645 = vmatpush1.bf16.msra.mxu0 0
          %646 = vmatprep.subr.bf16.mxu0 0
          %647 = vmatpush1.bf16.msra.mxu0 0
          %648 = vmatprep.subr.bf16.mxu0 0
          %649 = vmatpush1.bf16.msra.mxu0 0
          %650 = vmatprep.subr.bf16.mxu0 0
          %651 = vmatpush1.bf16.msra.mxu0 0
          %652 = vmatprep.subr.bf16.mxu0 0
          %653 = vmatpush1.bf16.msra.mxu0 0
          %654 = vmatprep.subr.bf16.mxu0 0
          %655 = vmatpush1.bf16.msra.mxu0 0
          %656 = vmatprep.subr.bf16.mxu0 0
          %657 = vmatpush1.bf16.msra.mxu0 0
          %658 = vmatprep.subr.bf16.mxu0 0
          %659 = vmatpush1.bf16.msra.mxu0 0
          %660 = vmatprep.subr.bf16.mxu0 0
          %661 = vmatpush1.bf16.msra.mxu0 0
          %662 = vmatprep.subr.bf16.mxu0 0
          %663 = vmatpush1.bf16.msra.mxu0 0
          %664 = vmatprep.mubr.bf16.mxu0 0
          %665 = vmatmul.mubr.bf16.gmra.mrb[0].mxu0 %v630
          %v666 = vpop.f32.mrb[0].mxu0
          %v667 = vadd.f32 0.0, %v666
          %v668 = vpop.f32.mrb[0].mxu0
          %v669 = vpop.f32.mrb[0].mxu0
          %v670 = vpop.f32.mrb[0].mxu0
          %671 = vdwg.mxu0
          %v672 = vld [vmem:[%s541] sm:$0xf]
          %v673 = vld [vmem:[%s541 + $0x4] sm:$0xf]
          %v674 = vld [vmem:[%s541 + $0x8] sm:$0xf]
          %v675 = vld [vmem:[%s541 + $0xc] sm:$0xf]
          %v680 = vunpack.c.l.b16 %v672
          %v681 = vunpack.c.l.b16 %v673
          %v682 = vunpack.c.l.b16 %v674
          %v683 = vunpack.c.l.b16 %v675
          %v684 = vpack.c.b16 %v681, %v680
          %v685 = vpack.c.b16 %v683, %v682
          %688 = vmatprep.subr.bf16.mxu0 0
          %689 = vmatpush1.bf16.msra.mxu0 %v684
          %690 = vmatprep.subr.bf16.mxu0 0
          %691 = vmatpush1.bf16.msra.mxu0 %v685
          %692 = vmatprep.subr.bf16.mxu0 0
          %693 = vmatpush1.bf16.msra.mxu0 0
          %694 = vmatprep.subr.bf16.mxu0 0
          %695 = vmatpush1.bf16.msra.mxu0 0
          %696 = vmatprep.subr.bf16.mxu0 0
          %697 = vmatpush1.bf16.msra.mxu0 0
          %698 = vmatprep.subr.bf16.mxu0 0
          %699 = vmatpush1.bf16.msra.mxu0 0
          %700 = vmatprep.subr.bf16.mxu0 0
          %701 = vmatpush1.bf16.msra.mxu0 0
          %702 = vmatprep.subr.bf16.mxu0 0
          %703 = vmatpush1.bf16.msra.mxu0 0
          %704 = vmatprep.subr.bf16.mxu0 0
          %705 = vmatpush1.bf16.msra.mxu0 0
          %706 = vmatprep.subr.bf16.mxu0 0
          %707 = vmatpush1.bf16.msra.mxu0 0
          %708 = vmatprep.subr.bf16.mxu0 0
          %709 = vmatpush1.bf16.msra.mxu0 0
          %710 = vmatprep.subr.bf16.mxu0 0
          %711 = vmatpush1.bf16.msra.mxu0 0
          %712 = vmatprep.subr.bf16.mxu0 0
          %713 = vmatpush1.bf16.msra.mxu0 0
          %714 = vmatprep.subr.bf16.mxu0 0
          %715 = vmatpush1.bf16.msra.mxu0 0
          %716 = vmatprep.subr.bf16.mxu0 0
          %717 = vmatpush1.bf16.msra.mxu0 0
          %718 = vmatprep.subr.bf16.mxu0 0
          %719 = vmatpush1.bf16.msra.mxu0 0
          %720 = vmatprep.mubr.bf16.mxu0 0
          %721 = vmatmul.mubr.bf16.gmra.mrb[0].mxu0 %v630
          %v722 = vpop.f32.mrb[0].mxu0
          %v723 = vadd.f32 0.0, %v722
          %v724 = vpop.f32.mrb[0].mxu0
          %v725 = vpop.f32.mrb[0].mxu0
          %v726 = vpop.f32.mrb[0].mxu0
          %727 = vdwg.mxu0
          %v728 = vxor.u32 %v667, 2147483648
          %v729 = vmul.f32 %v728, 1.442695
          %v730 = vpow.pop %v729
          %v731 = vadd.f32 %v730, 1.0
          %v732 = vrcp.pop %v731
          %v733 = vmul.f32 1.0, %v732
          %v734 = vmul.f32 %v667, %v733
          %v735 = vmul.f32 %v734, %v723
          %v736 = vpack.c.bf16 %v735, %v735
          %v737 = vld [vmem:[%s570] sm:$0xf]
          %v738 = vld [vmem:[%s570 + $0x4] sm:$0xf]
          %v739 = vld [vmem:[%s570 + $0x8] sm:$0xf]
          %v740 = vld [vmem:[%s570 + $0xc] sm:$0xf]
          %v741 = vld [vmem:[%s570 + $0x10] sm:$0xf]
          %v742 = vld [vmem:[%s570 + $0x14] sm:$0xf]
          %v743 = vld [vmem:[%s570 + $0x18] sm:$0xf]
          %v744 = vld [vmem:[%s570 + $0x1c] sm:$0xf]
          %v745 = vld [vmem:[%s570 + $0x20] sm:$0xf]
          %v746 = vld [vmem:[%s570 + $0x24] sm:$0xf]
          %v747 = vld [vmem:[%s570 + $0x28] sm:$0xf]
          %v748 = vld [vmem:[%s570 + $0x2c] sm:$0xf]
          %v749 = vld [vmem:[%s570 + $0x30] sm:$0xf]
          %v750 = vld [vmem:[%s570 + $0x34] sm:$0xf]
          %v751 = vld [vmem:[%s570 + $0x38] sm:$0xf]
          %v752 = vld [vmem:[%s570 + $0x3c] sm:$0xf]
          %v769 = vunpack.c.l.b16 %v737
          %v770 = vunpack.c.l.b16 %v738
          %v771 = vunpack.c.l.b16 %v739
          %v772 = vunpack.c.l.b16 %v740
          %v773 = vunpack.c.l.b16 %v741
          %v774 = vunpack.c.l.b16 %v742
          %v775 = vunpack.c.l.b16 %v743
          %v776 = vunpack.c.l.b16 %v744
          %v777 = vunpack.c.l.b16 %v745
          %v778 = vunpack.c.l.b16 %v746
          %v779 = vunpack.c.l.b16 %v747
          %v780 = vunpack.c.l.b16 %v748
          %v781 = vunpack.c.l.b16 %v749
          %v782 = vunpack.c.l.b16 %v750
          %v783 = vunpack.c.l.b16 %v751
          %v784 = vunpack.c.l.b16 %v752
          %v785 = vpack.c.b16 %v770, %v769
          %v786 = vpack.c.b16 %v772, %v771
          %v787 = vpack.c.b16 %v774, %v773
          %v788 = vpack.c.b16 %v776, %v775
          %v789 = vpack.c.b16 %v778, %v777
          %v790 = vpack.c.b16 %v780, %v779
          %v791 = vpack.c.b16 %v782, %v781
          %v792 = vpack.c.b16 %v784, %v783
          %801 = vmatprep.subr.bf16.mxu0 0
          %802 = vmatpush1.bf16.msra.mxu0 %v785
          %803 = vmatprep.subr.bf16.mxu0 0
          %804 = vmatpush1.bf16.msra.mxu0 %v786
          %805 = vmatprep.subr.bf16.mxu0 0
          %806 = vmatpush1.bf16.msra.mxu0 %v787
          %807 = vmatprep.subr.bf16.mxu0 0
          %808 = vmatpush1.bf16.msra.mxu0 %v788
          %809 = vmatprep.subr.bf16.mxu0 0
          %810 = vmatpush1.bf16.msra.mxu0 %v789
          %811 = vmatprep.subr.bf16.mxu0 0
          %812 = vmatpush1.bf16.msra.mxu0 %v790
          %813 = vmatprep.subr.bf16.mxu0 0
          %814 = vmatpush1.bf16.msra.mxu0 %v791
          %815 = vmatprep.subr.bf16.mxu0 0
          %816 = vmatpush1.bf16.msra.mxu0 %v792
          %817 = vmatprep.subr.bf16.mxu0 0
          %818 = vmatpush1.bf16.msra.mxu0 0
          %819 = vmatprep.subr.bf16.mxu0 0
          %820 = vmatpush1.bf16.msra.mxu0 0
          %821 = vmatprep.subr.bf16.mxu0 0
          %822 = vmatpush1.bf16.msra.mxu0 0
          %823 = vmatprep.subr.bf16.mxu0 0
          %824 = vmatpush1.bf16.msra.mxu0 0
          %825 = vmatprep.subr.bf16.mxu0 0
          %826 = vmatpush1.bf16.msra.mxu0 0
          %827 = vmatprep.subr.bf16.mxu0 0
          %828 = vmatpush1.bf16.msra.mxu0 0
          %829 = vmatprep.subr.bf16.mxu0 0
          %830 = vmatpush1.bf16.msra.mxu0 0
          %831 = vmatprep.subr.bf16.mxu0 0
          %832 = vmatpush1.bf16.msra.mxu0 0
          %833 = vmatprep.mubr.bf16.mxu0 0
          %834 = vmatmul.mubr.bf16.gmra.mrb[0].mxu0 %v736
          %v835 = vpop.f32.mrb[0].mxu0
          %v836 = vadd.f32 0.0, %v835
          %v837 = vpop.f32.mrb[0].mxu0
          %v838 = vpop.f32.mrb[0].mxu0
          %v839 = vpop.f32.mrb[0].mxu0
          %840 = vdwg.mxu0
          %v841 = vld [vmem:[%s491] sm:$0xff]
          %v842 = vld [vmem:[%s589] sm:$0xff]
          %844 = vset.pattern.permute.xlu0 0
          %845 = vperm.xlu0 %844, %v842
          %v846 = vpop.permute.xlu0 %845
          %v848 = vmul.f32 %v846, %v836
          %v849 = vadd.f32 %v841, %v848
          %850 = vst.msk [vmem:[%s491] sm:$0xff] %vm628, %v849
        $region48: #{moe_layer_forward.1} parent=39 // pred_fallthru
          _
        %s851 = sand.u32 %s256, 1
        %s852 = scalar_lea.sflag [#allocation6], %s851
        %s853 = sand.u32 %s256, 1
        %s854 = smul.addr %s853, 8
        %s855 = scalar_lea.vmem [#allocation5], %s854
        // Predicated region
        $region49: #{moe_layer_forward.1} parent=39 // pred_check
          %p856 = pneg %p266
        $region50: #{moe_layer_forward.1} parent=39 // pred_check_branch
          %858 = sbr.rel (%p856) target = $region52
        $region51: #{moe_layer_forward.1} parent=39 // pred_region
          %s860 = ssub.s32 128, 128
          %861 = vsyncadd %s852, %s860
          %s862 = smul.addr %s36, 128
          %s863 = scalar_lea.hbm %s7, %s862
          %s865 = sshll.u32 %s855, 4
          %s866 = int_to_ptr.vmem [resolvable:$true] %s865
          %868 = dma.vmem_to_hbm [thread:$0]  %s866, 128, %s863, %s852
        $region52: #{moe_layer_forward.1} parent=39 // pred_fallthru
          _
      $region40: #{moe_layer_forward.1} parent=5 // pred_fallthru
        _
      %p869 = scmp.le.s32.totalorder 2, %s26
      // Predicated region
      $region53: #{moe_layer_forward.1} parent=5 // pred_check
        %p870 = pneg %p869
      $region54: #{moe_layer_forward.1} parent=5 // pred_check_branch
        %872 = sbr.rel (%p870) target = $region56
      $region55: #{moe_layer_forward.1} parent=5 // pred_region
        %s873 = ssub.s32 %s26, 2
        // Predicated region
        $region57: #{moe_layer_forward.1} parent=55 // pred_check
          %p874 = pneg %p272
        $region58: #{moe_layer_forward.1} parent=55 // pred_check_branch
          %876 = sbr.rel (%p874) target = $region60
        $region59: #{moe_layer_forward.1} parent=55 // pred_region
          %s877 = sand.u32 %s257, 1
          %s878 = scalar_lea.sflag [#allocation6], %s877
          %s879 = sand.u32 %s257, 1
          %s880 = smul.addr %s879, 8
          %s881 = scalar_lea.vmem [#allocation5], %s880
          %882 = dma.done %s878, 128
        $region60: #{moe_layer_forward.1} parent=55 // pred_fallthru
          _
      $region56: #{moe_layer_forward.1} parent=5 // pred_fallthru
        _
    $region6: #{moe_layer_forward.1} parent=1 // loop_footer
      %s30 = sadd.s32 1, %s26
    $region7: #{moe_layer_forward.1} parent=1 // loop_footer_branch
      %25 = sbr.rel target = $region3
    $region8: #{moe_layer_forward.1} parent=1 // loop_exit
      _
    %883 = vsyncpa [#allocation6], 1
    %s884 = scalar_lea.sflag [#allocation6], 1
    %885 = vsyncpa %s884, 1

</llo_original>
